<compile_context>
chip_gen: v7x
topology: tpu7x:2x2x1
jax: 0.10.0
libtpu: 0.0.40
codegen_flags: <defaults>
</compile_context>

<pallas_src>
import jax
import jax.numpy as jnp
from jax.experimental import pallas as pl
from jax.experimental.pallas import tpu as pltpu

EPS = 1e-10
TAU = 1.0  # module hard-codes tau = 1; if it ever becomes a runtime value,
           # fold 1/tau into the mask kernel as a single multiply.


def _mask_kernel(logits_ref, u0_ref, u1_ref, mask_ref):
    """One-shot: compute the hard Gumbel mask (shape (1, C*H*W))."""
    u0 = u0_ref[...]
    u1 = u1_ref[...]
    logits = logits_ref[...]

    # Exact divide kept (runs once; avoids approx-reciprocal flips at the 0.5
    # threshold).  tau == 1.0 is folded away.
    noise = -jnp.log(jnp.log(u1 + EPS) / jnp.log(u0 + EPS) + EPS)
    res = jax.nn.sigmoid(logits + noise)

    # Forward value of the straight-through trick is exactly the hard mask
    # ((hard - res) + res == hard bitwise for res in [0,1]), so store it
    # directly.  TODO(synk): straight-through gradient would live in a custom
    # VJP; only the forward is implemented here.
    mask_ref[...] = (res > 0.5).astype(mask_ref.dtype)


def _apply_mask_kernel(mask_ref, x_ref, o_ref):
    # mask_ref: (1, CHW) grid-invariant; x_ref/o_ref: (NB, CHW) batch block.
    # Steady state: one vload, one VPU mul (sublane-broadcast of the mask),
    # one unmasked full-width vstore per vreg.
    o_ref[...] = x_ref[...] * mask_ref[...]


def gumbal_mask(x_nchw, logits_chw, u0_chw, u1_chw):
    """x_nchw: (N, C, H, W) f32; logits/u0/u1: (C, H, W) f32."""
    N, C, H, W = x_nchw.shape
    CHW = C * H * W
    # Lane-dense layout requires the flattened feature dim to be a multiple of
    # the 128-wide lane axis (true for (4,16,16) -> 1024).
    assert CHW % 128 == 0, "C*H*W must be a multiple of 128 for this layout"

    dtype = x_nchw.dtype
    logits2 = logits_chw.reshape(1, CHW).astype(dtype)
    u02 = u0_chw.reshape(1, CHW).astype(dtype)
    u12 = u1_chw.reshape(1, CHW).astype(dtype)
    x2 = x_nchw.reshape(N, CHW)

    # --- Pass 1: compute the (1, CHW) hard mask once (tiny one-shot call). ---
    mask = pl.pallas_call(
        _mask_kernel,
        out_shape=jax.ShapeDtypeStruct((1, CHW), dtype),
    )(logits2, u02, u12)

    # --- Pass 2: stream x in coarse, lane-dense batch blocks. ---
    bytes_per_row = CHW * 4
    if N * bytes_per_row <= (2 << 20):
        # Whole batch fits comfortably in one ~<=2 MiB block: no grid loop.
        nb = N
    else:
        # Target ~1-2 MiB per block, rows a multiple of 8 (sublane dense).
        nb = max(8, ((2 << 20) // bytes_per_row) // 8 * 8)
    grid = (pl.cdiv(N, nb),)

    out2 = pl.pallas_call(
        _apply_mask_kernel,
        out_shape=jax.ShapeDtypeStruct((N, CHW), dtype),
        grid_spec=pltpu.PrefetchScalarGridSpec(
            num_scalar_prefetch=0,
            grid=grid,
            in_specs=[
                pl.BlockSpec((1, CHW), lambda i: (0, 0)),    # mask (grid-invariant)
                pl.BlockSpec((nb, CHW), lambda i: (i, 0)),   # x batch block
            ],
            out_specs=pl.BlockSpec((nb, CHW), lambda i: (i, 0)),
        ),
        compiler_params=pltpu.CompilerParams(
            # Carry-free batch axis: shard across TensorCores on v7x.
            dimension_semantics=("parallel",),
        ),
    )(mask, x2)

    return out2.reshape(N, C, H, W)


def reference(x, logits, u0, u1):
    noise = -jnp.log(jnp.log(u1 + EPS) / jnp.log(u0 + EPS) + EPS)
    res = jax.nn.sigmoid((logits + noise) / TAU)
    hard = (res > 0.5).astype(res.dtype)
    res = (hard - res) + res
    return x * res[None, ...]


if __name__ == "__main__":
    N, C, H, W = 2, 4, 16, 16

    key = jax.random.PRNGKey(0)
    k_x, k_logit, k_u = jax.random.split(key, 3)

    x = jax.random.normal(k_x, (N, C, H, W), dtype=jnp.float32)
    # nn.Parameter(torch.randn(size) + 1.75), initialized deterministically here.
    logits = jax.random.normal(k_logit, (C, H, W), dtype=jnp.float32) + 1.75
    # uniform.new_empty([2, *size]).uniform_(0, 1)
    uniform = jax.random.uniform(k_u, (2, C, H, W), dtype=jnp.float32,
                                 minval=0.0, maxval=1.0)
    u0, u1 = uniform[0], uniform[1]

    out = gumbal_mask(x, logits, u0, u1)
    out = jax.block_until_ready(out)

    ref = reference(x, logits, u0, u1)
    assert out.shape == (N, C, H, W)
    assert jnp.allclose(out, ref, atol=1e-6, rtol=1e-6), "mismatch vs reference"

    print("KERNEL_OK")
</pallas_src>

<mosaic_0001>
module attributes {stable_mosaic.version = 11 : i64} {
  func.func @_mask_kernel(%arg0: memref<1x1024xf32, #tpu.memory_space<vmem>>, %arg1: memref<1x1024xf32, #tpu.memory_space<vmem>>, %arg2: memref<1x1024xf32, #tpu.memory_space<vmem>>, %arg3: memref<1x1024xf32, #tpu.memory_space<vmem>>) attributes {dimension_semantics = [], scalar_prefetch = 0 : i64, scratch_operands = 0 : i64, tpu.core_type = #tpu.core_type<tc>} {
    %c0 = arith.constant 0 : index
    %c0_0 = arith.constant 0 : index
    %0 = vector.load %arg1[%c0, %c0_0] : memref<1x1024xf32, #tpu.memory_space<vmem>>, vector<1x1024xf32>
    %c0_1 = arith.constant 0 : index
    %c0_2 = arith.constant 0 : index
    %1 = vector.load %arg2[%c0_1, %c0_2] : memref<1x1024xf32, #tpu.memory_space<vmem>>, vector<1x1024xf32>
    %c0_3 = arith.constant 0 : index
    %c0_4 = arith.constant 0 : index
    %2 = vector.load %arg0[%c0_3, %c0_4] : memref<1x1024xf32, #tpu.memory_space<vmem>>, vector<1x1024xf32>
    %cst = arith.constant 1.000000e-10 : f32
    %3 = vector.broadcast %cst : f32 to vector<1x1024xf32>
    %4 = arith.addf %1, %3 : vector<1x1024xf32>
    %5 = math.log %4 : vector<1x1024xf32>
    %cst_5 = arith.constant 1.000000e-10 : f32
    %6 = vector.broadcast %cst_5 : f32 to vector<1x1024xf32>
    %7 = arith.addf %0, %6 : vector<1x1024xf32>
    %8 = math.log %7 : vector<1x1024xf32>
    %9 = arith.divf %5, %8 : vector<1x1024xf32>
    %cst_6 = arith.constant 1.000000e-10 : f32
    %10 = vector.broadcast %cst_6 : f32 to vector<1x1024xf32>
    %11 = arith.addf %9, %10 : vector<1x1024xf32>
    %12 = math.log %11 : vector<1x1024xf32>
    %cst_7 = arith.constant 0.000000e+00 : f32
    %13 = vector.broadcast %cst_7 : f32 to vector<1x1024xf32>
    %14 = arith.subf %13, %12 : vector<1x1024xf32>
    %15 = arith.addf %2, %14 : vector<1x1024xf32>
    %16 = arith.negf %15 : vector<1x1024xf32>
    %17 = math.exp %16 : vector<1x1024xf32>
    %cst_8 = arith.constant 1.000000e+00 : f32
    %18 = vector.broadcast %cst_8 : f32 to vector<1x1024xf32>
    %19 = arith.addf %18, %17 : vector<1x1024xf32>
    %20 = arith.divf %18, %19 : vector<1x1024xf32>
    %cst_9 = arith.constant 5.000000e-01 : f32
    %21 = vector.broadcast %cst_9 : f32 to vector<1x1024xf32>
    %22 = arith.cmpf ogt, %20, %21 : vector<1x1024xf32>
    %23 = arith.extui %22 : vector<1x1024xi1> to vector<1x1024xi32>
    %24 = arith.sitofp %23 : vector<1x1024xi32> to vector<1x1024xf32>
    %c0_10 = arith.constant 0 : index
    %c0_11 = arith.constant 0 : index
    %25 = vector.load %arg3[%c0_10, %c0_11] : memref<1x1024xf32, #tpu.memory_space<vmem>>, vector<1x1024xf32>
    tpu.vector_store %arg3[%c0_10, %c0_11], %24 {strides = array<i32>} : memref<1x1024xf32, #tpu.memory_space<vmem>>, vector<1x1024xf32>,
    return
  }
}

</mosaic_0001>

<llo_original>
// kernel: tpu_custom_call.1
$region0: #{tpu_custom_call.1}
  #allocation0 [shape = 'u32[]', space=smem, size = 0x4, offset = 0x4, fixed_abs, tag = 'smem constant byte address 0x4 - core index']
  #allocation1 [shape = 'u32[144,128]{1,0:T(1,128)}', space=vmem, size = 0x12000, scoped, tag = 'internal scratch']
  %s0 = inlined_call_operand.hbm [shape: f32[1,1024], index: 0, kind: input, shape index: {}]
  %s1 = inlined_call_operand.hbm [shape: f32[1,1024], index: 1, kind: input, shape index: {}]
  %s2 = inlined_call_operand.hbm [shape: f32[1,1024], index: 2, kind: input, shape index: {}]
  %s3 = inlined_call_operand.hbm [shape: f32[1,1024], index: 3, kind: output, shape index: {}]
  %s4 = sld [smem:[#allocation0]]
  $region34: #{tpu_custom_call.1} parent=0
    _
  %s6 = ssub.s32 1, %s4
  %s7 = scalar_select 0, %s6, %s4
  $region1: #{tpu_custom_call.1} parent=0
    #allocation2 [shape = 'u8[4096]{0}', space=vmem, size = 0x1000, scoped, tag = 'input window, operand 0, single buffered']
    #allocation3 [shape = 's32[1]{0}', space=sflag, size = 0x4, scoped, tag = 'scoped memory for tpu_custom_call.1']
    #allocation4 [shape = 's32[1]{0}', space=sflag, size = 0x4, scoped, tag = 'scoped memory for tpu_custom_call.1']
    #allocation5 [shape = 'u8[4096]{0}', space=vmem, size = 0x1000, scoped, tag = 'input window, operand 1, single buffered']
    #allocation6 [shape = 's32[1]{0}', space=sflag, size = 0x4, scoped, tag = 'scoped memory for tpu_custom_call.1']
    #allocation7 [shape = 'u8[4096]{0}', space=vmem, size = 0x1000, scoped, tag = 'input window, operand 2, single buffered']
    #allocation8 [shape = 'u8[4096]{0}', space=vmem, size = 0x1000, scoped, tag = 'output window, operand 0, single buffered']
    %8 = vsyncpa [#allocation3], 0
    %9 = vsyncpa [#allocation6], 0
    %10 = vsyncpa [#allocation4], 0
    // Predicated region
    $region2: #{tpu_custom_call.1} parent=1 // pred_check
      _
    $region3: #{tpu_custom_call.1} parent=1 // pred_check_branch
      %12 = sbr.rel (0) target = $region5
    $region4: #{tpu_custom_call.1} parent=1 // pred_region
      %s14 = ssub.s32 128, 128
      %15 = vsyncadd [#allocation3], %s14
      %s17 = sshll.u32 [#allocation2], 4
      %s18 = int_to_ptr.vmem [resolvable:$true] %s17
      %20 = dma.hbm_to_vmem [thread:$0]  %s0, 128, %s18, [#allocation3]
    $region5: #{tpu_custom_call.1} parent=1 // pred_fallthru
      _
    // Predicated region
    $region6: #{tpu_custom_call.1} parent=1 // pred_check
      _
    $region7: #{tpu_custom_call.1} parent=1 // pred_check_branch
      %22 = sbr.rel (0) target = $region9
    $region8: #{tpu_custom_call.1} parent=1 // pred_region
      %s24 = ssub.s32 128, 128
      %25 = vsyncadd [#allocation6], %s24
      %s27 = sshll.u32 [#allocation5], 4
      %s28 = int_to_ptr.vmem [resolvable:$true] %s27
      %30 = dma.hbm_to_vmem [thread:$0]  %s1, 128, %s28, [#allocation6]
    $region9: #{tpu_custom_call.1} parent=1 // pred_fallthru
      _
    // Predicated region
    $region10: #{tpu_custom_call.1} parent=1 // pred_check
      _
    $region11: #{tpu_custom_call.1} parent=1 // pred_check_branch
      %32 = sbr.rel (0) target = $region13
    $region12: #{tpu_custom_call.1} parent=1 // pred_region
      %s34 = ssub.s32 128, 128
      %35 = vsyncadd [#allocation6], %s34
      %s37 = sshll.u32 [#allocation7], 4
      %s38 = int_to_ptr.vmem [resolvable:$true] %s37
      %40 = dma.hbm_to_vmem [thread:$0]  %s2, 128, %s38, [#allocation6]
    $region13: #{tpu_custom_call.1} parent=1 // pred_fallthru
      _
    // Predicated region
    $region14: #{tpu_custom_call.1} parent=1 // pred_check
      _
    $region15: #{tpu_custom_call.1} parent=1 // pred_check_branch
      %42 = sbr.rel (0) target = $region17
    $region16: #{tpu_custom_call.1} parent=1 // pred_region
      %43 = dma.done [#allocation3], 128
    $region17: #{tpu_custom_call.1} parent=1 // pred_fallthru
      _
    // Predicated region
    $region18: #{tpu_custom_call.1} parent=1 // pred_check
      _
    $region19: #{tpu_custom_call.1} parent=1 // pred_check_branch
      %45 = sbr.rel (0) target = $region21
    $region20: #{tpu_custom_call.1} parent=1 // pred_region
      %46 = dma.done [#allocation6], 128
    $region21: #{tpu_custom_call.1} parent=1 // pred_fallthru
      _
    // Predicated region
    $region22: #{tpu_custom_call.1} parent=1 // pred_check
      _
    $region23: #{tpu_custom_call.1} parent=1 // pred_check_branch
      %48 = sbr.rel (0) target = $region25
    $region24: #{tpu_custom_call.1} parent=1 // pred_region
      %49 = dma.done [#allocation6], 128
    $region25: #{tpu_custom_call.1} parent=1 // pred_fallthru
      _
    %v50 = vld [vmem:[#allocation5] sm:$0xff]
    %v51 = vld [vmem:[#allocation7] sm:$0xff]
    %v52 = vld [vmem:[#allocation2] sm:$0xff]
    %v53 = vadd.f32 %v51, 1e-10
    %v54 = vlog2.pop %v53
    %v55 = vmul.f32 %v54, 0.6931472
    %v56 = vadd.f32 %v50, 1e-10
    %v57 = vlog2.pop %v56
    %v58 = vmul.f32 %v57, 0.6931472
    %v59 = vrcp.pop %v58
    %v60 = vmul.f32 %v55, %v59
    %v61 = vadd.f32 %v60, 1e-10
    %v62 = vlog2.pop %v61
    %v63 = vmul.f32 %v62, 0.6931472
    %v64 = vsub.f32 0.0, %v63
    %v65 = vadd.f32 %v52, %v64
    %v66 = vxor.u32 %v65, 2147483648
    %v67 = vmul.f32 %v66, 1.442695
    %v68 = vpow.pop %v67
    %v69 = vadd.f32 %v68, 1.0
    %v70 = vrcp.pop %v69
    %v71 = vmul.f32 1.0, %v70
    %vm72 = vcmp.gt.f32.partialorder %v71, 0.5
    %v73 = vsel %vm72, 1, 0
    %v74 = vcvt.s32.f32 %v73
    %75 = vst [vmem:[#allocation8] sm:$0xff] %v74
    // Predicated region
    $region26: #{tpu_custom_call.1} parent=1 // pred_check
      _
    $region27: #{tpu_custom_call.1} parent=1 // pred_check_branch
      %77 = sbr.rel (0) target = $region29
    $region28: #{tpu_custom_call.1} parent=1 // pred_region
      %s79 = ssub.s32 128, 128
      %80 = vsyncadd [#allocation4], %s79
      %s82 = sshll.u32 [#allocation8], 4
      %s83 = int_to_ptr.vmem [resolvable:$true] %s82
      %85 = dma.vmem_to_hbm [thread:$0]  %s83, 128, %s3, [#allocation4]
    $region29: #{tpu_custom_call.1} parent=1 // pred_fallthru
      _
    // Predicated region
    $region30: #{tpu_custom_call.1} parent=1 // pred_check
      _
    $region31: #{tpu_custom_call.1} parent=1 // pred_check_branch
      %87 = sbr.rel (0) target = $region33
    $region32: #{tpu_custom_call.1} parent=1 // pred_region
      %88 = dma.done [#allocation4], 128
    $region33: #{tpu_custom_call.1} parent=1 // pred_fallthru
      _
    %89 = vsyncpa [#allocation3], 1
    %90 = vsyncpa [#allocation6], 1
    %91 = vsyncpa [#allocation4], 1

</llo_original>
